<compile_context>
chip_gen: v6e
topology: v6e:2x2x1
jax: 0.10.0
libtpu: 0.0.40
codegen_flags: <defaults>
</compile_context>

<pallas_src>
import math

import jax
import jax.numpy as jnp
from jax.experimental import pallas as pl
from jax.experimental.pallas import tpu as pltpu


def _ceil_div(a: int, b: int) -> int:
    return -(-a // b)


def _round_up(a: int, m: int) -> int:
    return _ceil_div(a, m) * m


def _build_pe(embed_dim: int, max_seq_len: int = 512, dtype=jnp.float32) -> jnp.ndarray:
    """Sinusoidal positional-encoding buffer, shape [1, max_seq_len, embed_dim]."""
    position = jnp.arange(0.0, max_seq_len, dtype=jnp.float32)[:, None]          # [L, 1]
    div_term = jnp.exp(
        jnp.arange(0, embed_dim, 2, dtype=jnp.float32) * (-(math.log(10000.0) / embed_dim))
    )                                                                             # [E/2]
    angles = position * div_term                                                  # [L, E/2]
    pe = jnp.zeros((max_seq_len, embed_dim), dtype=jnp.float32)
    pe = pe.at[:, 0::2].set(jnp.sin(angles))
    pe = pe.at[:, 1::2].set(jnp.cos(angles))
    return pe[None].astype(dtype)                                                 # [1, L, E]


def _add_pe_kernel(x_ref, pe_ref, o_ref):
    # Pure elementwise broadcast add on one tile (VPU work, HBM-bound overall).
    o_ref[...] = (x_ref[...] + pe_ref[...]).astype(o_ref.dtype)


def _vmem_capacity_bytes() -> int:
    """Generation-aware VMEM capacity (v5e/v6e: 128 MiB, v7x: 64 MiB)."""
    try:
        info = pltpu.get_tpu_info()
        cap = getattr(info, "vmem_capacity_bytes", None)
        if cap:
            return int(cap)
    except Exception:
        pass
    try:
        kind = jax.devices()[0].device_kind.lower()
        if "v7" in kind:
            return 64 * 1024 * 1024
        return 128 * 1024 * 1024          # v5e / v6e
    except Exception:
        return 64 * 1024 * 1024           # unknown generation: stay conservative


def _lane_dense_factorization(S: int, E: int) -> tuple[int, int, int]:
    """Fold (S_pad, E) -> (R, C) with C a multiple of 128 (unmasked lane-dense stores).

    Returns (S_pad, R, C). When E % 128 == 0 no fold is needed. Otherwise S is padded
    up to the smallest multiple of 128 / gcd(E, 128) so S_pad * E factors into a
    128-multiple lane width; the (at most 127-row) pad is sliced off after the kernel.
    """
    if E % 128 == 0:
        return S, S, E
    m = 128 // math.gcd(E, 128)
    S_pad = _round_up(S, m)
    F = S_pad * E
    C = 128
    # Widen lanes as far as the factorization allows (fewer, longer contiguous DMA
    # rows per tile); cap at 8192 lanes.
    while C * 2 <= min(F, 8192) and F % (C * 2) == 0:
        C *= 2
    return S_pad, F // C, C


class PositionalEncodingTPU:
    """TPU Pallas equivalent of the PyTorch PositionalEncoding module.

    pe is built once at init (cached per activation dtype / per lane-dense view),
    so each forward issues exactly one pallas_call with no per-call slice / cast /
    reshape copies of pe.
    """

    def __init__(self, embed_dim: int, max_seq_len: int = 512, dtype=jnp.float32):
        self.embed_dim = int(embed_dim)
        self.max_seq_len = int(max_seq_len)
        self.dtype = jnp.dtype(dtype)
        self._pe_by_dtype = {self.dtype: _build_pe(embed_dim, max_seq_len, self.dtype)}
        self._pe_view_cache = {}   # (dtype, S_pad, R, C) -> lane-dense pe view [1, R, C]

    # TODO(synk): PyTorch promotes bf16 x + fp32 pe to an fp32 result; here pe is
    # pre-cast once (and cached) to the activation dtype, so bf16 runs stay bf16.
    def _pe(self, dtype) -> jnp.ndarray:
        dtype = jnp.dtype(dtype)
        cached = self._pe_by_dtype.get(dtype)
        if cached is None:
            cached = self._pe_by_dtype[self.dtype].astype(dtype)
            self._pe_by_dtype[dtype] = cached
        return cached

    def _pe_view(self, dtype, S_pad: int, R: int, C: int) -> jnp.ndarray:
        """Cached lane-dense pe view [1, R, C]; built once per (dtype, shape)."""
        key = (jnp.dtype(dtype), S_pad, R, C)
        view = self._pe_view_cache.get(key)
        if view is None:
            rows = self._pe(dtype)[0, :min(S_pad, self.max_seq_len), :]
            if S_pad > self.max_seq_len:   # pad rows only feed output rows that get trimmed
                rows = jnp.pad(rows, ((0, S_pad - self.max_seq_len), (0, 0)))
            view = rows.reshape(1, R, C)
            self._pe_view_cache[key] = view
        return view

    def __call__(self, x: jnp.ndarray, *, max_tile_bytes: int | None = None,
                 donate_x: bool = False) -> jnp.ndarray:
        if x.ndim != 3 or x.shape[-1] != self.embed_dim:
            raise ValueError(f"expected x of shape [B, S, {self.embed_dim}], got {x.shape}")
        B, S, E = x.shape
        if S > self.max_seq_len:
            raise ValueError(f"sequence length {S} exceeds max_seq_len {self.max_seq_len}")

        dtype = x.dtype
        itemsize = jnp.dtype(dtype).itemsize
        S_pad, R, C = _lane_dense_factorization(S, E)

        # ---- x view: lane-dense fold (free bitcast) + optional small row pad -----
        if E % 128 == 0:
            x_view = x
        elif S_pad == S:
            x_view = x.reshape(B, R, C)
        else:
            # TODO(synk): the pad (and the trailing slice) are extra XLA copies of
            # x / out; they buy fully unmasked lane-dense stores inside the kernel
            # (matters most on v5e's single vector-store slot).
            x_view = jnp.pad(x, ((0, 0), (0, S_pad - S), (0, 0))).reshape(B, R, C)

        # ---- tile-size selection (generation aware) --------------------------------
        vmem_cap = _vmem_capacity_bytes()
        # The HBM-bound add saturates the roofline at ~1-4 MiB tiles; keep tiles small
        # so v7x's 64 MiB VMEM retains headroom (<= 6 live buffers x 4 MiB = 24 MiB).
        tile_target = min(vmem_cap // 16, 4 * 1024 * 1024)
        if max_tile_bytes is not None:
            tile_target = min(tile_target, int(max_tile_bytes))
        vmem_limit = int(min(vmem_cap * 3 // 4, 100 * 1024 * 1024))

        sub = max(8, 32 // itemsize)          # sublane packing multiple for this dtype
        total_bytes = B * R * C * itemsize
        tiny = total_bytes <= min(tile_target, 1 << 20)

        if tiny:
            tR, grid_s = R, 1
        else:
            row_bytes = C * itemsize
            rows_fit = max(1, tile_target // row_bytes)
            tR = R if rows_fit >= R else max(sub, (rows_fit // sub) * sub)
            grid_s = _ceil_div(R, tR)
            # Guarantee enough grid steps that both v7x TensorCores get work even
            # when B == 1 (and the DMA pipeline has something to overlap).
            min_steps = 4
            if grid_s * B < min_steps and R > sub:
                want_s = min(_ceil_div(min_steps, B), _ceil_div(R, sub))
                if want_s > grid_s:
                    tR = min(tR, max(sub, _round_up(_ceil_div(R, want_s), sub)))
                    grid_s = _ceil_div(R, tR)

        # ---- pe operand -------------------------------------------------------------
        # When E % 128 == 0 and the row-block is sublane aligned, pass the FULL
        # [1, max_seq_len, E] buffer: the index_map only touches rows [0, S), so no
        # wrapper slice/copy at all. Otherwise use the cached lane-dense view.
        if E % 128 == 0 and tR % sub == 0:
            pe_in = self._pe(dtype)
        else:
            pe_in = self._pe_view(dtype, S_pad, R, C)

        aliases = {0: 0} if donate_x else {}

        if tiny:
            # One grid step, whole tensor as one block: no per-step overhead.
            out = pl.pallas_call(
                _add_pe_kernel,
                out_shape=jax.ShapeDtypeStruct((B, R, C), dtype),
                grid_spec=pltpu.PrefetchScalarGridSpec(
                    num_scalar_prefetch=0,
                    grid=(1,),
                    in_specs=[
                        pl.BlockSpec((B, R, C), lambda i: (0, 0, 0)),
                        pl.BlockSpec((1, R, C), lambda i: (0, 0, 0)),
                    ],
                    out_specs=pl.BlockSpec((B, R, C), lambda i: (0, 0, 0)),
                ),
                compiler_params=pltpu.CompilerParams(
                    dimension_semantics=("arbitrary",),
                    vmem_limit_bytes=vmem_limit,
                ),
                input_output_aliases=aliases,
            )(x_view, pe_in)
        else:
            out = pl.pallas_call(
                _add_pe_kernel,
                out_shape=jax.ShapeDtypeStruct((B, R, C), dtype),
                grid_spec=pltpu.PrefetchScalarGridSpec(
                    num_scalar_prefetch=0,
                    # Batch is the innermost grid axis: the pe block index is constant
                    # across it, so the pe tile is NOT re-DMA'd per batch element.
                    grid=(grid_s, B),
                    in_specs=[
                        pl.BlockSpec((1, tR, C), lambda s, b: (b, s, 0)),   # x tile
                        pl.BlockSpec((1, tR, C), lambda s, b: (0, s, 0)),   # pe tile (broadcast)
                    ],
                    out_specs=pl.BlockSpec((1, tR, C), lambda s, b: (b, s, 0)),
                ),
                compiler_params=pltpu.CompilerParams(
                    # Both axes independent: v7x megacore can shard either one.
                    dimension_semantics=("parallel", "parallel"),
                    vmem_limit_bytes=vmem_limit,
                ),
                input_output_aliases=aliases,
            )(x_view, pe_in)

        out = out.reshape(B, S_pad, E)
        if S_pad != S:
            out = out[:, :S, :]
        return out


if __name__ == "__main__":
    key = jax.random.PRNGKey(0)

    # 1) Module-sized demo: tiny single-block path with lane-dense fold (E=32 < 128).
    B1, S1, E1 = 2, 8, 32
    mod1 = PositionalEncodingTPU(E1, max_seq_len=512)
    x1 = jax.random.normal(key, (B1, S1, E1), dtype=jnp.float32)
    out1 = jax.block_until_ready(mod1(x1))
    ref1 = x1 + mod1._pe(jnp.float32)[:, :S1, :]
    assert out1.shape == (B1, S1, E1)
    assert jnp.allclose(out1, ref1, atol=1e-6, rtol=1e-6)

    # 2) Sequence-tiled path with a masked remainder block (forced small tiles);
    #    E % 128 == 0 -> full pe buffer passed, no wrapper slice/copy.
    B2, S2, E2 = 2, 200, 128
    mod2 = PositionalEncodingTPU(E2, max_seq_len=512)
    x2 = jax.random.normal(jax.random.fold_in(key, 1), (B2, S2, E2), dtype=jnp.float32)
    out2 = jax.block_until_ready(mod2(x2, max_tile_bytes=64 * 1024))
    ref2 = x2 + mod2._pe(jnp.float32)[:, :S2, :]
    assert out2.shape == (B2, S2, E2)
    assert jnp.allclose(out2, ref2, atol=1e-6, rtol=1e-6)

    # 3) B == 1 grid splitting (keeps both v7x TensorCores busy) + aliased output
    #    under jit with input donation.
    B3, S3, E3 = 1, 512, 128
    mod3 = PositionalEncodingTPU(E3, max_seq_len=512)
    x3 = jax.random.normal(jax.random.fold_in(key, 2), (B3, S3, E3), dtype=jnp.float32)
    ref3 = jax.block_until_ready(x3 + mod3._pe(jnp.float32)[:, :S3, :])
    fwd3 = jax.jit(lambda xx: mod3(xx, max_tile_bytes=128 * 1024, donate_x=True),
                   donate_argnums=(0,))
    out3 = jax.block_until_ready(fwd3(x3))
    assert out3.shape == (B3, S3, E3)
    assert jnp.allclose(out3, ref3, atol=1e-6, rtol=1e-6)

    # 4) Sequence-pad fallback: S*E not a multiple of 128 -> pad S, lane-dense stores,
    #    trim the pad afterwards (replaces the old masked-store fallback).
    B4, S4, E4 = 2, 7, 24
    mod4 = PositionalEncodingTPU(E4, max_seq_len=64)
    x4 = jax.random.normal(jax.random.fold_in(key, 3), (B4, S4, E4), dtype=jnp.float32)
    out4 = jax.block_until_ready(mod4(x4))
    ref4 = x4 + mod4._pe(jnp.float32)[:, :S4, :]
    assert out4.shape == (B4, S4, E4)
    assert jnp.allclose(out4, ref4, atol=1e-6, rtol=1e-6)

    print("KERNEL_OK")
</pallas_src>

<mosaic_0001>
module attributes {stable_mosaic.version = 11 : i64} {
  func.func @_add_pe_kernel(%arg0: i32, %arg1: memref<2x1x256xf32, #tpu.memory_space<vmem>>, %arg2: memref<1x1x256xf32, #tpu.memory_space<vmem>>, %arg3: memref<2x1x256xf32, #tpu.memory_space<vmem>>) attributes {dimension_semantics = [#tpu.dimension_semantics<arbitrary>], iteration_bounds = array<i64: 1>, scalar_prefetch = 0 : i64, scratch_operands = 0 : i64, tpu.core_type = #tpu.core_type<tc>, window_params = [{pipeline_mode = #tpu.pipeline_mode<synchronous>, transform_indices = @transform_0, window_bounds = array<i64: 2, 1, 256>}, {pipeline_mode = #tpu.pipeline_mode<synchronous>, transform_indices = @transform_1, window_bounds = array<i64: 1, 1, 256>}, {pipeline_mode = #tpu.pipeline_mode<synchronous>, transform_indices = @transform_2, window_bounds = array<i64: 2, 1, 256>}]} {
    %c0 = arith.constant 0 : index
    %c0_0 = arith.constant 0 : index
    %c0_1 = arith.constant 0 : index
    %0 = vector.load %arg1[%c0, %c0_0, %c0_1] : memref<2x1x256xf32, #tpu.memory_space<vmem>>, vector<2x1x256xf32>
    %c0_2 = arith.constant 0 : index
    %c0_3 = arith.constant 0 : index
    %c0_4 = arith.constant 0 : index
    %1 = vector.load %arg2[%c0_2, %c0_3, %c0_4] : memref<1x1x256xf32, #tpu.memory_space<vmem>>, vector<1x1x256xf32>
    %2 = vector.broadcast %1 : vector<1x1x256xf32> to vector<2x1x256xf32>
    %3 = arith.addf %0, %2 : vector<2x1x256xf32>
    %c0_5 = arith.constant 0 : index
    %c0_6 = arith.constant 0 : index
    %c0_7 = arith.constant 0 : index
    %4 = vector.load %arg3[%c0_5, %c0_6, %c0_7] : memref<2x1x256xf32, #tpu.memory_space<vmem>>, vector<2x1x256xf32>
    tpu.vector_store %arg3[%c0_5, %c0_6, %c0_7], %3 {strides = array<i32>} : memref<2x1x256xf32, #tpu.memory_space<vmem>>, vector<2x1x256xf32>,
    return
  }
  func.func @transform_0(%arg0: i32) -> (i32, i32, i32) {
    %c0_i32 = arith.constant 0 : i32
    %c0_i32_0 = arith.constant 0 : i32
    %c0_i32_1 = arith.constant 0 : i32
    %c0_i32_2 = arith.constant 0 : i32
    return %c0_i32, %c0_i32_0, %c0_i32_1 : i32, i32, i32
  }
  func.func @transform_1(%arg0: i32) -> (i32, i32, i32) {
    %c0_i32 = arith.constant 0 : i32
    %c0_i32_0 = arith.constant 0 : i32
    %c0_i32_1 = arith.constant 0 : i32
    %c0_i32_2 = arith.constant 0 : i32
    return %c0_i32, %c0_i32_0, %c0_i32_1 : i32, i32, i32
  }
  func.func @transform_2(%arg0: i32) -> (i32, i32, i32) {
    %c0_i32 = arith.constant 0 : i32
    %c0_i32_0 = arith.constant 0 : i32
    %c0_i32_1 = arith.constant 0 : i32
    %c0_i32_2 = arith.constant 0 : i32
    return %c0_i32, %c0_i32_0, %c0_i32_1 : i32, i32, i32
  }
}

</mosaic_0001>

<llo_original>
// kernel: tpu_custom_call.1
$region0: #{tpu_custom_call.1}
  #allocation0 [shape = 'u32[]', space=smem, size = 0x4, offset = 0x4, fixed_abs, tag = 'smem constant byte address 0x4 - core index']
  #allocation1 [shape = 'u32[144,128]{1,0:T(1,128)}', space=vmem, size = 0x12000, scoped, tag = 'internal scratch']
  %s0 = inlined_call_operand.hbm [shape: f32[2,1,256], index: 0, kind: input, shape index: {}]
  %s1 = inlined_call_operand.hbm [shape: f32[1,1,256], index: 1, kind: input, shape index: {}]
  %s2 = inlined_call_operand.hbm [shape: f32[2,1,256], index: 2, kind: output, shape index: {}]
  %s3 = sld [smem:[#allocation0]]
  $region26: #{tpu_custom_call.1} parent=0
    _
  %s5 = ssub.s32 1, %s3
  %s6 = scalar_select 0, %s5, %s3
  $region1: #{tpu_custom_call.1} parent=0
    #allocation2 [shape = 'u8[2048]{0}', space=vmem, size = 0x800, scoped, tag = 'input window, operand 0, single buffered']
    #allocation3 [shape = 's32[1]{0}', space=sflag, size = 0x4, scoped, tag = 'scoped memory for tpu_custom_call.1']
    #allocation4 [shape = 's32[1]{0}', space=sflag, size = 0x4, scoped, tag = 'scoped memory for tpu_custom_call.1']
    #allocation5 [shape = 'u8[1024]{0}', space=vmem, size = 0x400, scoped, tag = 'input window, operand 1, single buffered']
    #allocation6 [shape = 's32[1]{0}', space=sflag, size = 0x4, scoped, tag = 'scoped memory for tpu_custom_call.1']
    #allocation7 [shape = 'u8[2048]{0}', space=vmem, size = 0x800, scoped, tag = 'output window, operand 0, single buffered']
    %7 = vsyncpa [#allocation3], 0
    %8 = vsyncpa [#allocation6], 0
    %9 = vsyncpa [#allocation4], 0
    // Predicated region
    $region2: #{tpu_custom_call.1} parent=1 // pred_check
      _
    $region3: #{tpu_custom_call.1} parent=1 // pred_check_branch
      %11 = sbr.rel (0) target = $region5
    $region4: #{tpu_custom_call.1} parent=1 // pred_region
      %s13 = ssub.s32 64, 64
      %14 = vsyncadd [#allocation3], %s13
      %s15 = sshll.u32 [#allocation2], 4
      %s16 = int_to_ptr.vmem [resolvable:$true] %s15
      %21 = dma.hbm_to_vmem [thread:$0]  %s0, 64, %s16, [#allocation3], 32, 32, 2
    $region5: #{tpu_custom_call.1} parent=1 // pred_fallthru
      _
    // Predicated region
    $region6: #{tpu_custom_call.1} parent=1 // pred_check
      _
    $region7: #{tpu_custom_call.1} parent=1 // pred_check_branch
      %23 = sbr.rel (0) target = $region9
    $region8: #{tpu_custom_call.1} parent=1 // pred_region
      %s25 = ssub.s32 32, 32
      %26 = vsyncadd [#allocation6], %s25
      %s28 = sshll.u32 [#allocation5], 4
      %s29 = int_to_ptr.vmem [resolvable:$true] %s28
      %31 = dma.hbm_to_vmem [thread:$0]  %s1, 32, %s29, [#allocation6]
    $region9: #{tpu_custom_call.1} parent=1 // pred_fallthru
      _
    // Predicated region
    $region10: #{tpu_custom_call.1} parent=1 // pred_check
      _
    $region11: #{tpu_custom_call.1} parent=1 // pred_check_branch
      %33 = sbr.rel (0) target = $region13
    $region12: #{tpu_custom_call.1} parent=1 // pred_region
      %34 = dma.done [#allocation3], 64
    $region13: #{tpu_custom_call.1} parent=1 // pred_fallthru
      _
    // Predicated region
    $region14: #{tpu_custom_call.1} parent=1 // pred_check
      _
    $region15: #{tpu_custom_call.1} parent=1 // pred_check_branch
      %36 = sbr.rel (0) target = $region17
    $region16: #{tpu_custom_call.1} parent=1 // pred_region
      %37 = dma.done [#allocation6], 32
    $region17: #{tpu_custom_call.1} parent=1 // pred_fallthru
      _
    %v38 = vld [vmem:[#allocation2] sm:$0x3]
    %v39 = vld [vmem:[#allocation2 + $0x2] sm:$0x3]
    %v40 = vld [vmem:[#allocation5] sm:$0x3]
    %v41 = vadd.f32 %v38, %v40
    %v42 = vadd.f32 %v39, %v40
    %v43 = vlaneseq
    %vm44 = vcmp.ge.s32.totalorder %v43, 0
    %vm45 = vcmp.lt.s32.totalorder %v43, 256
    %vm46 = vmand %vm44, %vm45
    %47 = vst.msk [vmem:[#allocation7] sm:$0x3] %vm46, %v41
    %48 = vst.msk [vmem:[#allocation7 + $0x2] sm:$0x3] %vm46, %v42
    // Predicated region
    $region18: #{tpu_custom_call.1} parent=1 // pred_check
      _
    $region19: #{tpu_custom_call.1} parent=1 // pred_check_branch
      %50 = sbr.rel (0) target = $region21
    $region20: #{tpu_custom_call.1} parent=1 // pred_region
      %s52 = ssub.s32 64, 64
      %53 = vsyncadd [#allocation4], %s52
      %s54 = sshll.u32 [#allocation7], 4
      %s55 = int_to_ptr.vmem [resolvable:$true] %s54
      %60 = dma.vmem_to_hbm [thread:$0]  %s55, 64, %s2, [#allocation4], 32, 32, 2
    $region21: #{tpu_custom_call.1} parent=1 // pred_fallthru
      _
    // Predicated region
    $region22: #{tpu_custom_call.1} parent=1 // pred_check
      _
    $region23: #{tpu_custom_call.1} parent=1 // pred_check_branch
      %62 = sbr.rel (0) target = $region25
    $region24: #{tpu_custom_call.1} parent=1 // pred_region
      %63 = dma.done [#allocation4], 64
    $region25: #{tpu_custom_call.1} parent=1 // pred_fallthru
      _
    %64 = vsyncpa [#allocation3], 1
    %65 = vsyncpa [#allocation6], 1
    %66 = vsyncpa [#allocation4], 1

</llo_original>
